<compile_context>
chip_gen: v7x
topology: tpu7x:2x2x1
jax: 0.10.0
libtpu: 0.0.40
codegen_flags: <defaults>
</compile_context>

<pallas_src>
import functools

import jax
import jax.numpy as jnp
from jax.experimental import pallas as pl
from jax.experimental.pallas import tpu as pltpu


def _round_up(x: int, m: int) -> int:
    return ((x + m - 1) // m) * m


def _mean_dim1_kernel(x_ref, o_ref, acc_ref, *, n_rows, denom, tn, mask_last):
    """x_ref: (TB, TN, TD) tile; acc_ref: (TB, TD) f32 scratch; o_ref: (TB, TD)."""
    k = pl.program_id(2)
    nk = pl.num_programs(2)

    @pl.when(k == 0)
    def _init():
        acc_ref[...] = jnp.zeros_like(acc_ref)

    if mask_last:
        # Hot path: every tile except the (statically-known ragged) last one is
        # a plain cast + sum -- no iota/compare/select on the HBM-bound stream.
        @pl.when(k < nk - 1)
        def _body_full():
            acc_ref[...] += jnp.sum(x_ref[...].astype(jnp.float32), axis=1)

        @pl.when(k == nk - 1)
        def _body_masked():
            x = x_ref[...]
            # Narrow (1, TN, 1) predicate broadcast over the tile; mask BEFORE
            # the f32 cast so padded rows never pollute the sum.
            row = jax.lax.broadcasted_iota(jnp.int32, (1, tn, 1), 1) + k * tn
            x = jnp.where(row < n_rows, x, jnp.zeros((), x.dtype))
            acc_ref[...] += jnp.sum(x.astype(jnp.float32), axis=1)
    else:
        acc_ref[...] += jnp.sum(x_ref[...].astype(jnp.float32), axis=1)

    @pl.when(k == nk - 1)
    def _finalize():
        # Divide by the TRUE N exactly once, at the end.
        o_ref[...] = (acc_ref[...] * (1.0 / denom)).astype(o_ref.dtype)


def _mean_dim1_pallas(x, *, denom, out_dtype, tile_bytes):
    """Mean over axis 1 of a 3-D array x=(B, Nr, Dd), dividing by `denom`."""
    B, Nr, Dd = x.shape
    itemsize = jnp.dtype(x.dtype).itemsize
    out_itemsize = jnp.dtype(out_dtype).itemsize
    sub = 8 if itemsize >= 4 else (16 if itemsize == 2 else 32)

    # --- batch tile: output second-to-last dim -> multiple of 8 or full B ---
    TB = B if B <= 8 else 8
    nb = pl.cdiv(B, TB)

    # --- lane (D) tile -------------------------------------------------------
    TD = Dd
    if TB * sub * Dd * itemsize > tile_bytes:
        # Even one sublane group of N per tile blows the budget -> tile D.
        TD = max(128, (tile_bytes // max(1, TB * sub * itemsize)) // 128 * 128)
        TD = min(TD, _round_up(Dd, 128))
        if TD >= Dd:
            TD = Dd
    # v7x megacore: if the batch axis collapsed to one block, split D so the
    # "parallel" axes still have >= 2 blocks (harmless on single-TC v5e/v6e).
    if nb == 1 and TD == Dd and Dd >= 256:
        TD = _round_up(pl.cdiv(Dd, 2), 128)
    nd = pl.cdiv(Dd, TD)

    # --- N (reduction) tile --------------------------------------------------
    tn_cand = max(sub, (tile_bytes // max(1, TB * TD * itemsize)) // sub * sub)
    TN = min(tn_cand, _round_up(Nr, sub))
    if TN >= Nr:
        TN = Nr  # full extent along N is always a legal block dim
    nk = pl.cdiv(Nr, TN)
    mask_last = (Nr % TN) != 0  # only emit the mask branch when actually needed

    kernel = functools.partial(
        _mean_dim1_kernel, n_rows=Nr, denom=denom, tn=TN, mask_last=mask_last
    )

    # Raise the scoped VMEM limit to cover double-buffered tiles (+ margin),
    # keeping well under v7x's 64 MiB physical VMEM.
    in_tile_bytes = TB * TN * TD * itemsize
    out_tile_bytes = TB * TD * out_itemsize
    vmem_need = 2 * in_tile_bytes + 2 * out_tile_bytes + TB * TD * 4
    vmem_limit = int(min(max(vmem_need + (8 << 20), 32 << 20), 48 << 20))

    return pl.pallas_call(
        kernel,
        out_shape=jax.ShapeDtypeStruct((B, Dd), out_dtype),
        grid_spec=pltpu.PrefetchScalarGridSpec(
            num_scalar_prefetch=0,
            grid=(nb, nd, nk),
            in_specs=[pl.BlockSpec((TB, TN, TD), lambda b, d, k: (b, k, d))],
            out_specs=pl.BlockSpec((TB, TD), lambda b, d, k: (b, d)),
            scratch_shapes=[pltpu.VMEM((TB, TD), jnp.float32)],
        ),
        compiler_params=pltpu.CompilerParams(
            dimension_semantics=("parallel", "parallel", "arbitrary"),
            vmem_limit_bytes=vmem_limit,
        ),
        cost_estimate=pl.CostEstimate(
            flops=B * Nr * Dd,
            transcendentals=0,
            bytes_accessed=B * Nr * Dd * itemsize + B * Dd * out_itemsize,
        ),
    )(x)


def mean_aggregator(data: jax.Array, *, tile_bytes: int = 6 << 20) -> jax.Array:
    """Pallas equivalent of MeanAggregator.forward(data, dim=1) for 3-D input."""
    # TODO(synk): only the default dim=1 on 3-D input is implemented.
    assert data.ndim == 3, "expected (B, N, D)"
    B, N, D = data.shape

    # Lane-density fold for small D: view as (B, N//g, g*D) so the HBM stream,
    # vregs and the output store are lane-dense (free contiguous reshape).
    g = 1
    if D < 128:
        g_cand = 128 // D
        if g_cand >= 2 and N % g_cand == 0:
            g = g_cand

    if g > 1:
        x = data.reshape(B, N // g, g * D)
        # Kernel divides by the true N; keep f32 until the groups are collapsed.
        folded = _mean_dim1_pallas(
            x, denom=N, out_dtype=jnp.float32, tile_bytes=tile_bytes
        )  # (B, g*D)
        return folded.reshape(B, g, D).sum(axis=1).astype(data.dtype)

    return _mean_dim1_pallas(
        data, denom=N, out_dtype=data.dtype, tile_bytes=tile_bytes
    )


if __name__ == "__main__":
    key = jax.random.PRNGKey(0)

    # Small base case (exercises the lane-density fold: D=32 -> g=4).
    B, N, D = 2, 8, 32
    x = jax.random.normal(key, (B, N, D), dtype=jnp.float32)
    out = mean_aggregator(x)
    jax.block_until_ready(out)
    ref = jnp.mean(x, axis=1)
    assert out.shape == (B, D)
    assert jnp.allclose(out, ref, atol=1e-5, rtol=1e-5)

    # bf16, B > tile, N equal to full-extent tile (no mask emitted).
    B2, N2, D2 = 10, 37, 128
    x2 = jax.random.normal(jax.random.PRNGKey(1), (B2, N2, D2), dtype=jnp.bfloat16)
    out2 = mean_aggregator(x2)
    jax.block_until_ready(out2)
    ref2 = jnp.mean(x2.astype(jnp.float32), axis=1).astype(jnp.bfloat16)
    assert out2.shape == (B2, D2)
    assert jnp.allclose(out2.astype(jnp.float32), ref2.astype(jnp.float32),
                        atol=2e-2, rtol=2e-2)

    # Force small tiles to exercise multi-tile N, the ragged-last-tile mask
    # branch, and the D split used for the v7x parallel axis.
    B3, N3, D3 = 3, 197, 256
    x3 = jax.random.normal(jax.random.PRNGKey(2), (B3, N3, D3), dtype=jnp.float32)
    out3 = mean_aggregator(x3, tile_bytes=64 * 1024)
    jax.block_until_ready(out3)
    ref3 = jnp.mean(x3, axis=1)
    assert out3.shape == (B3, D3)
    assert jnp.allclose(out3, ref3, atol=1e-5, rtol=1e-5)

    print("KERNEL_OK")
</pallas_src>

<mosaic_0001>
module attributes {stable_mosaic.version = 11 : i64} {
  func.func @_mean_dim1_kernel(%arg0: i32, %arg1: i32, %arg2: i32, %arg3: memref<2x2x128xf32, #tpu.memory_space<vmem>>, %arg4: memref<2x128xf32, #tpu.memory_space<vmem>>, %arg5: memref<2x128xf32, #tpu.memory_space<vmem>>) attributes {dimension_semantics = [#tpu.dimension_semantics<parallel>, #tpu.dimension_semantics<parallel>, #tpu.dimension_semantics<arbitrary>], iteration_bounds = array<i64: 1, 1, 1>, scalar_prefetch = 0 : i64, scratch_operands = 1 : i64, tpu.core_type = #tpu.core_type<tc>, window_params = [{transform_indices = @transform_0, window_bounds = array<i64: 2, 2, 128>}, {transform_indices = @transform_1, window_bounds = array<i64: 2, 128>}]} {
    %c0_i32 = arith.constant 0 : i32
    %0 = arith.cmpi eq, %arg2, %c0_i32 : i32
    %1 = arith.extui %0 : i1 to i32
    %c0_i32_0 = arith.constant 0 : i32
    %2 = arith.cmpi ne, %1, %c0_i32_0 : i32
    scf.if %2 {
      %cst_9 = arith.constant 0.000000e+00 : f32
      %11 = vector.broadcast %cst_9 : f32 to vector<2x128xf32>
      %c0_10 = arith.constant 0 : index
      %c0_11 = arith.constant 0 : index
      %12 = vector.load %arg5[%c0_10, %c0_11] : memref<2x128xf32, #tpu.memory_space<vmem>>, vector<2x128xf32>
      tpu.vector_store %arg5[%c0_10, %c0_11], %11 {strides = array<i32>} : memref<2x128xf32, #tpu.memory_space<vmem>>, vector<2x128xf32>,
    } else {
    }
    %c0 = arith.constant 0 : index
    %c0_1 = arith.constant 0 : index
    %3 = vector.load %arg5[%c0, %c0_1] : memref<2x128xf32, #tpu.memory_space<vmem>>, vector<2x128xf32>
    %c0_2 = arith.constant 0 : index
    %c0_3 = arith.constant 0 : index
    %c0_4 = arith.constant 0 : index
    %4 = vector.load %arg3[%c0_2, %c0_3, %c0_4] : memref<2x2x128xf32, #tpu.memory_space<vmem>>, vector<2x2x128xf32>
    %cst = arith.constant dense<0.000000e+00> : vector<2x128xf32>
    %5 = vector.multi_reduction <add>, %4, %cst [1] : vector<2x2x128xf32> to vector<2x128xf32>
    %6 = arith.addf %3, %5 : vector<2x128xf32>
    %c0_5 = arith.constant 0 : index
    %c0_6 = arith.constant 0 : index
    %7 = vector.load %arg5[%c0_5, %c0_6] : memref<2x128xf32, #tpu.memory_space<vmem>>, vector<2x128xf32>
    tpu.vector_store %arg5[%c0_5, %c0_6], %6 {strides = array<i32>} : memref<2x128xf32, #tpu.memory_space<vmem>>, vector<2x128xf32>,
    %c0_i32_7 = arith.constant 0 : i32
    %8 = arith.cmpi eq, %arg2, %c0_i32_7 : i32
    %9 = arith.extui %8 : i1 to i32
    %c0_i32_8 = arith.constant 0 : i32
    %10 = arith.cmpi ne, %9, %c0_i32_8 : i32
    scf.if %10 {
      %c0_9 = arith.constant 0 : index
      %c0_10 = arith.constant 0 : index
      %11 = vector.load %arg5[%c0_9, %c0_10] : memref<2x128xf32, #tpu.memory_space<vmem>>, vector<2x128xf32>
      %cst_11 = arith.constant 1.250000e-01 : f32
      %12 = vector.broadcast %cst_11 : f32 to vector<2x128xf32>
      %13 = arith.mulf %11, %12 : vector<2x128xf32>
      %c0_12 = arith.constant 0 : index
      %c0_13 = arith.constant 0 : index
      %14 = vector.load %arg4[%c0_12, %c0_13] : memref<2x128xf32, #tpu.memory_space<vmem>>, vector<2x128xf32>
      tpu.vector_store %arg4[%c0_12, %c0_13], %13 {strides = array<i32>} : memref<2x128xf32, #tpu.memory_space<vmem>>, vector<2x128xf32>,
    } else {
    }
    return
  }
  func.func @transform_0(%arg0: i32, %arg1: i32, %arg2: i32) -> (i32, i32, i32) {
    %c0_i32 = arith.constant 0 : i32
    return %arg0, %arg2, %arg1 : i32, i32, i32
  }
  func.func @transform_1(%arg0: i32, %arg1: i32, %arg2: i32) -> (i32, i32) {
    %c0_i32 = arith.constant 0 : i32
    return %arg0, %arg1 : i32, i32
  }
}

</mosaic_0001>

<llo_original>
// kernel: tpu_custom_call.1
$region0: #{tpu_custom_call.1}
  #allocation0 [shape = 'u32[]', space=smem, size = 0x4, offset = 0x4, fixed_abs, tag = 'smem constant byte address 0x4 - core index']
  #allocation1 [shape = 'u32[144,128]{1,0:T(1,128)}', space=vmem, size = 0x12000, scoped, tag = 'internal scratch']
  #allocation2 [shape = 'f32[2,128]{1,0:T(2,128)}', space=vmem, size = 0x400, scoped, tag = 'scratch operand']
  %s0 = inlined_call_operand.hbm [shape: f32[2,2,128], index: 0, kind: input, shape index: {}]
  %s1 = inlined_call_operand.hbm [shape: f32[2,128], index: 1, kind: output, shape index: {}]
  %s2 = sld [smem:[#allocation0]]
  $region26: #{tpu_custom_call.1} parent=0
    _
  %s4 = ssub.s32 1, %s2
  %s5 = scalar_select 0, %s4, %s2
  $region1: #{tpu_custom_call.1} parent=0
    #allocation3 [shape = 'u8[2048]{0}', space=vmem, size = 0x800, scoped, tag = 'input window, operand 0, single buffered']
    #allocation4 [shape = 's32[1]{0}', space=sflag, size = 0x4, scoped, tag = 'scoped memory for tpu_custom_call.1']
    #allocation5 [shape = 's32[1]{0}', space=sflag, size = 0x4, scoped, tag = 'scoped memory for tpu_custom_call.1']
    #allocation6 [shape = 'u8[1024]{0}', space=vmem, size = 0x400, scoped, tag = 'output window, operand 0, single buffered']
    %6 = vsyncpa [#allocation4], 0
    %7 = vsyncpa [#allocation5], 0
    // Predicated region
    $region2: #{tpu_custom_call.1} parent=1 // pred_check
      _
    $region3: #{tpu_custom_call.1} parent=1 // pred_check_branch
      %9 = sbr.rel (0) target = $region5
    $region4: #{tpu_custom_call.1} parent=1 // pred_region
      %s11 = ssub.s32 64, 64
      %12 = vsyncadd [#allocation4], %s11
      %s13 = sshll.u32 [#allocation3], 4
      %s14 = int_to_ptr.vmem [resolvable:$true] %s13
      %19 = dma.hbm_to_vmem [thread:$0]  %s0, 64, %s14, [#allocation4], 32, 32, 2
    $region5: #{tpu_custom_call.1} parent=1 // pred_fallthru
      _
    // Predicated region
    $region6: #{tpu_custom_call.1} parent=1 // pred_check
      _
    $region7: #{tpu_custom_call.1} parent=1 // pred_check_branch
      %21 = sbr.rel (0) target = $region9
    $region8: #{tpu_custom_call.1} parent=1 // pred_region
      %22 = dma.done [#allocation4], 64
    $region9: #{tpu_custom_call.1} parent=1 // pred_fallthru
      _
    %p23 = scmp.eq.s32.totalorder 0, 0
    // Predicated region
    $region10: #{tpu_custom_call.1} parent=1 // pred_check
      %p24 = pneg %p23
    $region11: #{tpu_custom_call.1} parent=1 // pred_check_branch
      %26 = sbr.rel (%p24) target = $region13
    $region12: #{tpu_custom_call.1} parent=1 // pred_region
      %27 = vst [vmem:[#allocation2] sm:$0x3] 0.0
    $region13: #{tpu_custom_call.1} parent=1 // pred_fallthru
      _
    %v28 = vld [vmem:[#allocation2] sm:$0x3]
    %v29 = vld [vmem:[#allocation3] sm:$0x3]
    %v30 = vld [vmem:[#allocation3 + $0x2] sm:$0x3]
    %vm31 = vcmask 1041408
    %v32 = vsel %vm31, %v29, 0.0
    %v33 = vrot.slane %v32, 4
    %v34 = vadd.f32 %v32, %v33
    %v35 = vrot.slane %v34, 2
    %v36 = vadd.f32 %v34, %v35
    %v37 = vrot.slane %v36, 1
    %v38 = vadd.f32 %v36, %v37
    %v39 = vsel %vm31, %v30, 0.0
    %v40 = vrot.slane %v39, 4
    %v41 = vadd.f32 %v39, %v40
    %v42 = vrot.slane %v41, 2
    %v43 = vadd.f32 %v41, %v42
    %v44 = vrot.slane %v43, 1
    %v45 = vadd.f32 %v43, %v44
    %vm48 = vcmask 1041409
    %v49 = vsel %vm48, %v45, %v38
    %v51 = vadd.f32 %v28, %v49
    %52 = vst [vmem:[#allocation2] sm:$0x3] %v51
    // Predicated region
    $region14: #{tpu_custom_call.1} parent=1 // pred_check
      %p53 = pneg %p23
    $region15: #{tpu_custom_call.1} parent=1 // pred_check_branch
      %55 = sbr.rel (%p53) target = $region17
    $region16: #{tpu_custom_call.1} parent=1 // pred_region
      %v56 = vld [vmem:[#allocation2] sm:$0x3]
      %v57 = vmul.f32 %v56, 0.125
      %58 = vst [vmem:[#allocation6] sm:$0x3] %v57
    $region17: #{tpu_custom_call.1} parent=1 // pred_fallthru
      _
    // Predicated region
    $region18: #{tpu_custom_call.1} parent=1 // pred_check
      _
    $region19: #{tpu_custom_call.1} parent=1 // pred_check_branch
      %60 = sbr.rel (0) target = $region21
    $region20: #{tpu_custom_call.1} parent=1 // pred_region
      %s62 = ssub.s32 32, 32
      %63 = vsyncadd [#allocation5], %s62
      %s65 = sshll.u32 [#allocation6], 4
      %s66 = int_to_ptr.vmem [resolvable:$true] %s65
      %68 = dma.vmem_to_hbm [thread:$0]  %s66, 32, %s1, [#allocation5]
    $region21: #{tpu_custom_call.1} parent=1 // pred_fallthru
      _
    // Predicated region
    $region22: #{tpu_custom_call.1} parent=1 // pred_check
      _
    $region23: #{tpu_custom_call.1} parent=1 // pred_check_branch
      %70 = sbr.rel (0) target = $region25
    $region24: #{tpu_custom_call.1} parent=1 // pred_region
      %71 = dma.done [#allocation5], 32
    $region25: #{tpu_custom_call.1} parent=1 // pred_fallthru
      _
    %72 = vsyncpa [#allocation4], 1
    %73 = vsyncpa [#allocation5], 1

</llo_original>
